<compile_context>
chip_gen: v7x
topology: tpu7x:2x2x1
jax: 0.10.0
libtpu: 0.0.40
codegen_flags: <defaults>
</compile_context>

<pallas_src>
import functools

import jax
import jax.numpy as jnp
from jax.experimental import pallas as pl
from jax.experimental.pallas import tpu as pltpu


# ----------------------------------------------------------------------------
# Kernels
# ----------------------------------------------------------------------------
def _channel_attention_kernel(x_ref, o_ref, *, inv_count):
    # x_ref / o_ref: (TILE_ROWS, COLS) VMEM tiles (COLS = full spatial extent).
    s = jnp.sum(x_ref[...], axis=-1, keepdims=True, dtype=jnp.float32)  # (TILE_ROWS, 1)
    attn = jax.nn.sigmoid(s * inv_count).astype(o_ref.dtype)            # cast tiny column first
    o_ref[...] = jnp.broadcast_to(attn, o_ref.shape)


def _reduce_kernel(x_ref, attn_ref, *, cols, tile_cols, inv_count):
    # Pass 1 of the huge-H*W fallback: column-tiled reduction.
    # attn_ref: (TILE_ROWS, 1) f32, resident across the column (reduction) axis.
    j = pl.program_id(1)

    @pl.when(j == 0)
    def _():
        attn_ref[...] = jnp.zeros_like(attn_ref)

    xv = x_ref[...]
    if cols % tile_cols != 0:
        # Mask lanes past the true spatial extent in the partial last block.
        lane = jax.lax.broadcasted_iota(jnp.int32, x_ref.shape, 1)
        valid = (j * tile_cols + lane) < cols
        xv = jnp.where(valid, xv, jnp.zeros_like(xv))
    attn_ref[...] += jnp.sum(xv, axis=-1, keepdims=True, dtype=jnp.float32)

    @pl.when(j == pl.num_programs(1) - 1)
    def _():
        attn_ref[...] = jax.nn.sigmoid(attn_ref[...] * inv_count)


def _broadcast_kernel(attn_ref, o_ref):
    # Pass 2 of the fallback: broadcast the (TILE_ROWS, 1) attention column.
    o_ref[...] = jnp.broadcast_to(attn_ref[...].astype(o_ref.dtype), o_ref.shape)


# ----------------------------------------------------------------------------
# Wrapper
# ----------------------------------------------------------------------------
def _round_up(v, m):
    return ((v + m - 1) // m) * m


def _vmem_budget():
    """Per-generation (block_budget_bytes, vmem_limit_bytes)."""
    vmem_cap = None
    try:
        info = pltpu.get_tpu_info()
        vmem_cap = getattr(info, "vmem_capacity_bytes", None)
    except Exception:
        vmem_cap = None
    if vmem_cap is None:
        vmem_cap = 64 * 1024 * 1024  # conservative (v7x-sized) fallback
    if vmem_cap >= 100 * 1024 * 1024:
        # v5e / v6e: 128 MiB physical VMEM.
        return 20 * 1024 * 1024, 96 * 1024 * 1024
    # v7x: 64 MiB physical VMEM per TensorCore.
    return 10 * 1024 * 1024, 48 * 1024 * 1024


def channel_attention(x: jax.Array) -> jax.Array:
    """x: (N, C, H, W) -> (N, C, H, W) channel-attention map sigmoid(mean_{H,W}(x))."""
    N, C, H, W = x.shape
    rows = N * C
    cols = H * W
    x2d = x.reshape(rows, cols)                       # free (contiguous) reshape

    itemsize = jnp.dtype(x.dtype).itemsize
    row_align = 8 * max(1, 4 // itemsize)             # 8 f32, 16 bf16, 32 int8
    block_budget, vmem_limit = _vmem_budget()
    bytes_per_row = cols * itemsize
    min_tile_rows = min(row_align, rows)              # full-extent block is legal if rows < align
    inv_count = 1.0 / cols

    compiler_params_1d = pltpu.CompilerParams(
        dimension_semantics=("parallel",),
        vmem_limit_bytes=vmem_limit,
    )

    if min_tile_rows * bytes_per_row <= block_budget:
        # ---------------- Single-pass path: full spatial extent per block. ----------------
        budget_rows = max(row_align, (block_budget // bytes_per_row) // row_align * row_align)
        # Aim for >= 4 row blocks so v7x's two TensorCores both get work,
        # without dropping below the budget-amortizing tile size.
        target_rows = max(row_align, _round_up(pl.cdiv(rows, 4), row_align))
        tile_rows = min(budget_rows, target_rows)
        if tile_rows >= rows:
            tile_rows = rows                          # full-extent block is always legal

        grid = (pl.cdiv(rows, tile_rows),)            # partial last block: rows independent

        out2d = pl.pallas_call(
            functools.partial(_channel_attention_kernel, inv_count=inv_count),
            out_shape=jax.ShapeDtypeStruct((rows, cols), x.dtype),
            grid_spec=pl.GridSpec(
                grid=grid,
                in_specs=[pl.BlockSpec((tile_rows, cols), lambda i: (i, 0))],
                out_specs=pl.BlockSpec((tile_rows, cols), lambda i: (i, 0)),
            ),
            compiler_params=compiler_params_1d,
            cost_estimate=pl.CostEstimate(
                flops=rows * cols,
                transcendentals=rows,
                bytes_accessed=2 * rows * cols * itemsize,
            ),
        )(x2d)
        return out2d.reshape(N, C, H, W)

    # ---------------- Two-pass fallback: huge H*W (one row block would bust VMEM). --------
    tile_rows = min(row_align, rows)
    tile_cols = max(128, (block_budget // max(1, tile_rows * itemsize)) // 128 * 128)
    tile_cols = min(tile_cols, _round_up(cols, 128))
    grid2 = (pl.cdiv(rows, tile_rows), pl.cdiv(cols, tile_cols))

    # Pass 1: column-tiled reduction -> sigmoid(mean) as (rows, 1) f32.
    attn = pl.pallas_call(
        functools.partial(_reduce_kernel, cols=cols, tile_cols=tile_cols, inv_count=inv_count),
        out_shape=jax.ShapeDtypeStruct((rows, 1), jnp.float32),
        grid_spec=pl.GridSpec(
            grid=grid2,
            in_specs=[pl.BlockSpec((tile_rows, tile_cols), lambda i, j: (i, j))],
            out_specs=pl.BlockSpec((tile_rows, 1), lambda i, j: (i, 0)),
        ),
        compiler_params=pltpu.CompilerParams(
            dimension_semantics=("parallel", "arbitrary"),
            vmem_limit_bytes=vmem_limit,
        ),
        cost_estimate=pl.CostEstimate(
            flops=rows * cols,
            transcendentals=rows,
            bytes_accessed=rows * cols * itemsize + rows * 4,
        ),
    )(x2d)

    # Pass 2: broadcast the attention column back to the full spatial map.
    out2d = pl.pallas_call(
        _broadcast_kernel,
        out_shape=jax.ShapeDtypeStruct((rows, cols), x.dtype),
        grid_spec=pl.GridSpec(
            grid=grid2,
            in_specs=[pl.BlockSpec((tile_rows, 1), lambda i, j: (i, 0))],
            out_specs=pl.BlockSpec((tile_rows, tile_cols), lambda i, j: (i, j)),
        ),
        compiler_params=pltpu.CompilerParams(
            dimension_semantics=("parallel", "parallel"),
            vmem_limit_bytes=vmem_limit,
        ),
        cost_estimate=pl.CostEstimate(
            flops=0,
            transcendentals=0,
            bytes_accessed=rows * 4 + rows * cols * itemsize,
        ),
    )(attn)
    return out2d.reshape(N, C, H, W)


def _reference(x):
    attn = jax.nn.sigmoid(jnp.mean(x, axis=(2, 3)))  # (N, C)
    return jnp.broadcast_to(attn[:, :, None, None], x.shape)


if __name__ == "__main__":
    key = jax.random.PRNGKey(0)

    # Aligned spatial size (H*W multiple of 128).
    x = jax.random.normal(key, (2, 4, 16, 16), dtype=jnp.float32)
    out = jax.block_until_ready(channel_attention(x))
    ref = _reference(x)
    assert out.shape == x.shape, (out.shape, x.shape)
    assert jnp.allclose(out, ref, atol=1e-5, rtol=1e-5), float(jnp.max(jnp.abs(out - ref)))

    # Misaligned spatial size (H*W = 225, not a multiple of 128) + partial row tile.
    x2 = jax.random.normal(jax.random.PRNGKey(1), (2, 6, 15, 15), dtype=jnp.float32)
    out2 = jax.block_until_ready(channel_attention(x2))
    ref2 = _reference(x2)
    assert out2.shape == x2.shape, (out2.shape, x2.shape)
    assert jnp.allclose(out2, ref2, atol=1e-5, rtol=1e-5), float(jnp.max(jnp.abs(out2 - ref2)))

    print("KERNEL_OK")
</pallas_src>

<mosaic_0001>
module attributes {stable_mosaic.version = 11 : i64} {
  func.func @_channel_attention_kernel(%arg0: i32, %arg1: memref<8x256xf32, #tpu.memory_space<vmem>>, %arg2: memref<8x256xf32, #tpu.memory_space<vmem>>) attributes {dimension_semantics = [#tpu.dimension_semantics<parallel>], iteration_bounds = array<i64: 1>, scalar_prefetch = 0 : i64, scratch_operands = 0 : i64, tpu.core_type = #tpu.core_type<tc>, window_params = [{transform_indices = @transform_0, window_bounds = array<i64: 8, 256>}, {transform_indices = @transform_1, window_bounds = array<i64: 8, 256>}]} {
    %c0 = arith.constant 0 : index
    %c0_0 = arith.constant 0 : index
    %0 = vector.load %arg1[%c0, %c0_0] : memref<8x256xf32, #tpu.memory_space<vmem>>, vector<8x256xf32>
    %cst = arith.constant dense<0.000000e+00> : vector<8xf32>
    %1 = vector.multi_reduction <add>, %0, %cst [1] : vector<8x256xf32> to vector<8xf32>
    %2 = vector.shape_cast %1 : vector<8xf32> to vector<8x1xf32>
    %cst_1 = arith.constant 3.906250e-03 : f32
    %3 = vector.broadcast %cst_1 : f32 to vector<8x1xf32>
    %4 = arith.mulf %2, %3 : vector<8x1xf32>
    %5 = arith.negf %4 : vector<8x1xf32>
    %6 = math.exp %5 : vector<8x1xf32>
    %cst_2 = arith.constant 1.000000e+00 : f32
    %7 = vector.broadcast %cst_2 : f32 to vector<8x1xf32>
    %8 = arith.addf %7, %6 : vector<8x1xf32>
    %9 = arith.divf %7, %8 : vector<8x1xf32>
    %10 = vector.shape_cast %9 : vector<8x1xf32> to vector<8x1xf32>
    %11 = vector.broadcast %10 : vector<8x1xf32> to vector<8x256xf32>
    %c0_3 = arith.constant 0 : index
    %c0_4 = arith.constant 0 : index
    %12 = vector.load %arg2[%c0_3, %c0_4] : memref<8x256xf32, #tpu.memory_space<vmem>>, vector<8x256xf32>
    tpu.vector_store %arg2[%c0_3, %c0_4], %11 {strides = array<i32>} : memref<8x256xf32, #tpu.memory_space<vmem>>, vector<8x256xf32>,
    return
  }
  func.func @transform_0(%arg0: i32) -> (i32, i32) {
    %c0_i32 = arith.constant 0 : i32
    %c0_i32_0 = arith.constant 0 : i32
    return %arg0, %c0_i32 : i32, i32
  }
  func.func @transform_1(%arg0: i32) -> (i32, i32) {
    %c0_i32 = arith.constant 0 : i32
    %c0_i32_0 = arith.constant 0 : i32
    return %arg0, %c0_i32 : i32, i32
  }
}

</mosaic_0001>

<llo_original>
// kernel: tpu_custom_call.1
$region0: #{tpu_custom_call.1}
  #allocation0 [shape = 'u32[]', space=smem, size = 0x4, offset = 0x4, fixed_abs, tag = 'smem constant byte address 0x4 - core index']
  #allocation1 [shape = 'u32[144,128]{1,0:T(1,128)}', space=vmem, size = 0x12000, scoped, tag = 'internal scratch']
  %s0 = inlined_call_operand.hbm [shape: f32[8,256], index: 0, kind: input, shape index: {}]
  %s1 = inlined_call_operand.hbm [shape: f32[8,256], index: 1, kind: output, shape index: {}]
  %s2 = sld [smem:[#allocation0]]
  $region18: #{tpu_custom_call.1} parent=0
    _
  %s4 = ssub.s32 1, %s2
  %s5 = scalar_select 0, %s4, %s2
  $region1: #{tpu_custom_call.1} parent=0
    #allocation2 [shape = 'u8[8192]{0}', space=vmem, size = 0x2000, scoped, tag = 'input window, operand 0, single buffered']
    #allocation3 [shape = 's32[1]{0}', space=sflag, size = 0x4, scoped, tag = 'scoped memory for tpu_custom_call.1']
    #allocation4 [shape = 's32[1]{0}', space=sflag, size = 0x4, scoped, tag = 'scoped memory for tpu_custom_call.1']
    #allocation5 [shape = 'u8[8192]{0}', space=vmem, size = 0x2000, scoped, tag = 'output window, operand 0, single buffered']
    %6 = vsyncpa [#allocation3], 0
    %7 = vsyncpa [#allocation4], 0
    // Predicated region
    $region2: #{tpu_custom_call.1} parent=1 // pred_check
      _
    $region3: #{tpu_custom_call.1} parent=1 // pred_check_branch
      %9 = sbr.rel (0) target = $region5
    $region4: #{tpu_custom_call.1} parent=1 // pred_region
      %s11 = ssub.s32 256, 256
      %12 = vsyncadd [#allocation3], %s11
      %s14 = sshll.u32 [#allocation2], 4
      %s15 = int_to_ptr.vmem [resolvable:$true] %s14
      %17 = dma.hbm_to_vmem [thread:$0]  %s0, 256, %s15, [#allocation3]
    $region5: #{tpu_custom_call.1} parent=1 // pred_fallthru
      _
    // Predicated region
    $region6: #{tpu_custom_call.1} parent=1 // pred_check
      _
    $region7: #{tpu_custom_call.1} parent=1 // pred_check_branch
      %19 = sbr.rel (0) target = $region9
    $region8: #{tpu_custom_call.1} parent=1 // pred_region
      %20 = dma.done [#allocation3], 256
    $region9: #{tpu_custom_call.1} parent=1 // pred_fallthru
      _
    %v21 = vld [vmem:[#allocation2] sm:$0xff]
    %v22 = vld [vmem:[#allocation2 + $0x8] sm:$0xff]
    %v23 = vadd.f32 %v21, %v22
    %24 = vadd.xlane.f32.xlu0 %v23
    %v25 = vpop.xlane.xlu0 %24
    %v26 = vmul.f32 %v25, 0.00390625
    %v27 = vxor.u32 %v26, 2147483648
    %v28 = vmul.f32 %v27, 1.442695
    %v29 = vpow.pop %v28
    %v30 = vadd.f32 %v29, 1.0
    %v31 = vrcp.pop %v30
    %v32 = vmul.f32 1.0, %v31
    %33 = vst [vmem:[#allocation5] sm:$0xff] %v32
    %34 = vst [vmem:[#allocation5 + $0x8] sm:$0xff] %v32
    // Predicated region
    $region10: #{tpu_custom_call.1} parent=1 // pred_check
      _
    $region11: #{tpu_custom_call.1} parent=1 // pred_check_branch
      %36 = sbr.rel (0) target = $region13
    $region12: #{tpu_custom_call.1} parent=1 // pred_region
      %s38 = ssub.s32 256, 256
      %39 = vsyncadd [#allocation4], %s38
      %s41 = sshll.u32 [#allocation5], 4
      %s42 = int_to_ptr.vmem [resolvable:$true] %s41
      %44 = dma.vmem_to_hbm [thread:$0]  %s42, 256, %s1, [#allocation4]
    $region13: #{tpu_custom_call.1} parent=1 // pred_fallthru
      _
    // Predicated region
    $region14: #{tpu_custom_call.1} parent=1 // pred_check
      _
    $region15: #{tpu_custom_call.1} parent=1 // pred_check_branch
      %46 = sbr.rel (0) target = $region17
    $region16: #{tpu_custom_call.1} parent=1 // pred_region
      %47 = dma.done [#allocation4], 256
    $region17: #{tpu_custom_call.1} parent=1 // pred_fallthru
      _
    %48 = vsyncpa [#allocation3], 1
    %49 = vsyncpa [#allocation4], 1

</llo_original>
